<compile_context>
chip_gen: v7x
topology: tpu7x:2x2x1
jax: 0.10.0
libtpu: 0.0.40
codegen_flags: <defaults>
</compile_context>

<pallas_src>
import math

import jax
import jax.numpy as jnp
from jax.experimental import pallas as pl
from jax.experimental.pallas import tpu as pltpu


def _round_up(x, m):
    return ((x + m - 1) // m) * m


def _vmem_budget_bytes():
    """Generation-aware VMEM limit: ~3/4 of physical per-TC VMEM.

    v5e/v6e: 128 MiB -> 96 MiB;  v7x: 64 MiB -> 48 MiB.
    """
    try:
        cap = int(pltpu.get_tpu_info().vmem_capacity_bytes)
    except Exception:
        cap = 64 * 1024 * 1024  # conservative fallback: v7x per-TC physical
    budget = (cap * 3) // 4
    return int(max(32 * 1024 * 1024, min(budget, 96 * 1024 * 1024)))


def _choose_tile_m(tile_m, M, K_pad, N_pad, out_bytes, vmem_budget):
    """Pick the M tile: big enough to amortize per-step overhead, capped so the
    grid has >= 2 steps (v7x megacore) and the VMEM footprint fits."""
    tm = min(tile_m, _round_up(max(-(-M // 2), 16), 16))   # cdiv(M,2), >=16, mult of 16
    tm = max(tm, 16)

    def footprint(t):
        return (2 * t * K_pad * 2             # bf16 patch tiles, double-buffered
                + 2 * t * N_pad * out_bytes   # output tiles, double-buffered
                + 2 * K_pad * N_pad * 2       # resident weight (worst case 2 bufs)
                + 2 * N_pad * 4)              # bias

    budget = int(vmem_budget * 0.9)           # slack for compiler scratch
    while tm > 16 and footprint(tm) > budget:
        tm = max(16, _round_up(tm // 2, 16))
    return tm


# ----------------------------- Pallas kernel ------------------------------- #
def _patch_embed_kernel(x_ref, w_ref, b_ref, o_ref):
    # x_ref: (TM, K_pad)    bf16 flattened patches for this tile
    # w_ref: (K_pad, N_pad) bf16 projection weight (transposed conv weight)
    # b_ref: (1, N_pad)     f32 bias
    # o_ref: (TM, N_pad)    embeddings (out dtype)
    acc = jnp.dot(x_ref[...], w_ref[...], preferred_element_type=jnp.float32)
    o_ref[...] = (acc + b_ref[...]).astype(o_ref.dtype)


def patch_embed_matmul(patches, w_t, bias2d, *, out_dtype, tile_m=2048):
    """patches: (M, K), w_t: (K, N), bias2d: (1, N) -> (M, N) via Pallas."""
    M, K = patches.shape
    _, N = w_t.shape

    # Dense (16,128) tiling: pad lane dims (K of patches, N of weight/out) to
    # multiples of 128; padded rows/cols are zero and contribute nothing.
    N_pad = _round_up(max(N, 128), 128)
    K_pad = _round_up(max(K, 128), 128)

    vmem_budget = _vmem_budget_bytes()
    out_bytes = jnp.dtype(out_dtype).itemsize
    TM = _choose_tile_m(tile_m, M, K_pad, N_pad, out_bytes, vmem_budget)
    M_pad = _round_up(M, TM)

    if K_pad != K:
        patches = jnp.pad(patches, ((0, 0), (0, K_pad - K)))
        w_t = jnp.pad(w_t, ((0, K_pad - K), (0, 0)))
    if N_pad != N:
        w_t = jnp.pad(w_t, ((0, 0), (0, N_pad - N)))
        bias2d = jnp.pad(bias2d, ((0, 0), (0, N_pad - N)))
    if M_pad != M:
        patches = jnp.pad(patches, ((0, M_pad - M), (0, 0)))

    # Feed the MXU bf16 operands; keep bias (and accumulation) in f32.
    patches = patches.astype(jnp.bfloat16)
    w_t = w_t.astype(jnp.bfloat16)
    bias2d = bias2d.astype(jnp.float32)

    def build_call(single_buffer_resident):
        # Resident operands (constant index_map) are fetched once; single
        # buffering avoids a wasted extra K_pad*N_pad*2B VMEM buffer.
        if single_buffer_resident:
            resident_kwargs = dict(pipeline_mode=pl.Buffered(1))
        else:
            resident_kwargs = {}
        return pl.pallas_call(
            _patch_embed_kernel,
            out_shape=jax.ShapeDtypeStruct((M_pad, N_pad), out_dtype),
            grid_spec=pltpu.PrefetchScalarGridSpec(
                num_scalar_prefetch=0,
                grid=(M_pad // TM,),
                in_specs=[
                    # streamed patch tiles (double-buffered by Pallas)
                    pl.BlockSpec((TM, K_pad), lambda i: (i, 0)),
                    # weight / bias stay resident across the whole grid
                    pl.BlockSpec((K_pad, N_pad), lambda i: (0, 0), **resident_kwargs),
                    pl.BlockSpec((1, N_pad), lambda i: (0, 0), **resident_kwargs),
                ],
                out_specs=pl.BlockSpec((TM, N_pad), lambda i: (i, 0)),
            ),
            compiler_params=pltpu.CompilerParams(
                # M tiles are independent -> megacore-shard across TCs on v7x.
                dimension_semantics=("parallel",),
                vmem_limit_bytes=vmem_budget,
            ),
        )

    try:
        out = build_call(True)(patches, w_t, bias2d)
    except Exception:
        # Fallback for JAX versions that reject pipeline_mode=pl.Buffered(1).
        out = build_call(False)(patches, w_t, bias2d)

    # Strip M / N padding.
    return out[:M, :N]


# --------------------------- module-level wrapper --------------------------- #
def patch_embedding_forward(x, weight, bias, patch_size, *, out_dtype=None,
                            tile_m=2048):
    """
    x:      (B, C, H, W)            NCHW image
    weight: (dim, C, ph, pw)        Conv2d weight (kernel == stride == patch)
    bias:   (dim,)                  Conv2d bias
    returns (B, num_patches, dim)
    """
    B, C, H, W = x.shape
    dim = weight.shape[0]
    ph = pw = patch_size
    nph, npw = H // ph, W // pw
    num_patches = nph * npw
    if out_dtype is None:
        out_dtype = x.dtype

    # Extract non-overlapping patches; flatten each patch in (C, ph, pw) order
    # to match Conv2d's weight flattening.  Cast to bf16 FIRST so the layout
    # glue pass moves half the bytes (the MXU consumes bf16 anyway).
    # TODO(synk): fully fuse the NCHW patch gather into the kernel via a grid
    # over (B*nph,) with an x in_spec block of (1, C, ph, W) and an in-VMEM
    # rearrangement before the dot, removing this extra HBM pass entirely.
    xb = x.astype(jnp.bfloat16)
    patches = xb.reshape(B, C, nph, ph, npw, pw)
    patches = patches.transpose(0, 2, 4, 1, 3, 5)             # (B, nph, npw, C, ph, pw)
    patches = patches.reshape(B * num_patches, C * ph * pw)   # (M, K)

    w_t = weight.reshape(dim, C * ph * pw).T                  # (K, N)
    b2 = bias.reshape(1, dim)                                 # (1, N)

    out = patch_embed_matmul(patches, w_t, b2, out_dtype=out_dtype, tile_m=tile_m)
    return out.reshape(B, num_patches, dim)                   # (B, num_patches, dim)


# ----------------------- deterministic parameter init ----------------------- #
def init_params(key, in_channels, dim, patch_size, dtype=jnp.float32):
    kw, kb = jax.random.split(key)
    fan_in = in_channels * patch_size * patch_size
    fan_out = dim
    # xavier_uniform_ on the flattened (dim, C*ph*pw) view, as in init_weights()
    limit = math.sqrt(6.0 / (fan_in + fan_out))
    weight = jax.random.uniform(
        kw, (dim, in_channels, patch_size, patch_size),
        minval=-limit, maxval=limit, dtype=dtype)
    # Conv2d default bias init: U(-1/sqrt(fan_in), 1/sqrt(fan_in))
    b_lim = 1.0 / math.sqrt(fan_in)
    bias = jax.random.uniform(kb, (dim,), minval=-b_lim, maxval=b_lim, dtype=dtype)
    return weight, bias


if __name__ == "__main__":
    # Small config: batch=2, channels=4, image 16x16, patch 8, dim=32
    B, C, H, W = 2, 4, 16, 16
    patch_size = 8
    dim = 32

    key = jax.random.PRNGKey(0)
    kx, kp = jax.random.split(key)
    x = jax.random.normal(kx, (B, C, H, W), dtype=jnp.float32)
    weight, bias = init_params(kp, C, dim, patch_size)

    out = patch_embedding_forward(x, weight, bias, patch_size)
    out = jax.block_until_ready(out)

    # Reference check against lax conv (same semantics as nn.Conv2d), f32.
    ref = jax.lax.conv_general_dilated(
        x, weight, window_strides=(patch_size, patch_size), padding="VALID",
        dimension_numbers=("NCHW", "OIHW", "NCHW"))
    ref = ref + bias[None, :, None, None]
    ref = ref.reshape(B, dim, -1).transpose(0, 2, 1)  # flatten(2).transpose(1,2)

    assert out.shape == (B, (H // patch_size) * (W // patch_size), dim)
    # Loose tolerance: kernel matmul runs with bf16 operands (f32 accumulate).
    assert jnp.allclose(out, ref, atol=5e-2, rtol=5e-2)

    print("KERNEL_OK")
</pallas_src>

<mosaic_0001>
module attributes {stable_mosaic.version = 11 : i64} {
  func.func @_patch_embed_kernel(%arg0: i32, %arg1: memref<16x256xbf16, #tpu.memory_space<vmem>>, %arg2: memref<256x128xbf16, #tpu.memory_space<vmem>>, %arg3: memref<1x128xf32, #tpu.memory_space<vmem>>, %arg4: memref<16x128xf32, #tpu.memory_space<vmem>>) attributes {dimension_semantics = [#tpu.dimension_semantics<parallel>], iteration_bounds = array<i64: 1>, scalar_prefetch = 0 : i64, scratch_operands = 0 : i64, tpu.core_type = #tpu.core_type<tc>, window_params = [{transform_indices = @transform_0, window_bounds = array<i64: 16, 256>}, {pipeline_mode = #tpu.pipeline_mode<synchronous>, transform_indices = @transform_1, window_bounds = array<i64: 256, 128>}, {pipeline_mode = #tpu.pipeline_mode<synchronous>, transform_indices = @transform_2, window_bounds = array<i64: 1, 128>}, {transform_indices = @transform_3, window_bounds = array<i64: 16, 128>}]} {
    %c0 = arith.constant 0 : index
    %c0_0 = arith.constant 0 : index
    %0 = vector.load %arg1[%c0, %c0_0] : memref<16x256xbf16, #tpu.memory_space<vmem>>, vector<16x256xbf16>
    %c0_1 = arith.constant 0 : index
    %c0_2 = arith.constant 0 : index
    %1 = vector.load %arg2[%c0_1, %c0_2] : memref<256x128xbf16, #tpu.memory_space<vmem>>, vector<256x128xbf16>
    %cst = arith.constant dense<0.000000e+00> : vector<16x128xf32>
    %2 = tpu.matmul %0, %1, %cst {dimension_numbers = #tpu.dot_dimension_numbers<[1], [0], [0], [1], [0, 0, 1, 1], [], []>} : vector<16x256xbf16>, vector<256x128xbf16>, vector<16x128xf32> -> vector<16x128xf32>
    %c0_3 = arith.constant 0 : index
    %c0_4 = arith.constant 0 : index
    %3 = vector.load %arg3[%c0_3, %c0_4] : memref<1x128xf32, #tpu.memory_space<vmem>>, vector<1x128xf32>
    %4 = vector.broadcast %3 : vector<1x128xf32> to vector<16x128xf32>
    %5 = arith.addf %2, %4 : vector<16x128xf32>
    %c0_5 = arith.constant 0 : index
    %c0_6 = arith.constant 0 : index
    %6 = vector.load %arg4[%c0_5, %c0_6] : memref<16x128xf32, #tpu.memory_space<vmem>>, vector<16x128xf32>
    tpu.vector_store %arg4[%c0_5, %c0_6], %5 {strides = array<i32>} : memref<16x128xf32, #tpu.memory_space<vmem>>, vector<16x128xf32>,
    return
  }
  func.func @transform_0(%arg0: i32) -> (i32, i32) {
    %c0_i32 = arith.constant 0 : i32
    %c0_i32_0 = arith.constant 0 : i32
    return %arg0, %c0_i32 : i32, i32
  }
  func.func @transform_1(%arg0: i32) -> (i32, i32) {
    %c0_i32 = arith.constant 0 : i32
    %c0_i32_0 = arith.constant 0 : i32
    %c0_i32_1 = arith.constant 0 : i32
    return %c0_i32, %c0_i32_0 : i32, i32
  }
  func.func @transform_2(%arg0: i32) -> (i32, i32) {
    %c0_i32 = arith.constant 0 : i32
    %c0_i32_0 = arith.constant 0 : i32
    %c0_i32_1 = arith.constant 0 : i32
    return %c0_i32, %c0_i32_0 : i32, i32
  }
  func.func @transform_3(%arg0: i32) -> (i32, i32) {
    %c0_i32 = arith.constant 0 : i32
    %c0_i32_0 = arith.constant 0 : i32
    return %arg0, %c0_i32 : i32, i32
  }
}

module attributes {stable_mosaic.version = 11 : i64} {
  func.func @_patch_embed_kernel(%arg0: i32, %arg1: memref<16x256xbf16, #tpu.memory_space<vmem>>, %arg2: memref<256x128xbf16, #tpu.memory_space<vmem>>, %arg3: memref<1x128xf32, #tpu.memory_space<vmem>>, %arg4: memref<16x128xf32, #tpu.memory_space<vmem>>) attributes {dimension_semantics = [#tpu.dimension_semantics<parallel>], iteration_bounds = array<i64: 1>, scalar_prefetch = 0 : i64, scratch_operands = 0 : i64, tpu.core_type = #tpu.core_type<tc>, window_params = [{transform_indices = @transform_0, window_bounds = array<i64: 16, 256>}, {pipeline_mode = #tpu.pipeline_mode<synchronous>, transform_indices = @transform_1, window_bounds = array<i64: 256, 128>}, {pipeline_mode = #tpu.pipeline_mode<synchronous>, transform_indices = @transform_2, window_bounds = array<i64: 1, 128>}, {transform_indices = @transform_3, window_bounds = array<i64: 16, 128>}]} {
    %c0 = arith.constant 0 : index
    %c0_0 = arith.constant 0 : index
    %0 = vector.load %arg1[%c0, %c0_0] : memref<16x256xbf16, #tpu.memory_space<vmem>>, vector<16x256xbf16>
    %c0_1 = arith.constant 0 : index
    %c0_2 = arith.constant 0 : index
    %1 = vector.load %arg2[%c0_1, %c0_2] : memref<256x128xbf16, #tpu.memory_space<vmem>>, vector<256x128xbf16>
    %cst = arith.constant dense<0.000000e+00> : vector<16x128xf32>
    %2 = tpu.matmul %0, %1, %cst {dimension_numbers = #tpu.dot_dimension_numbers<[1], [0], [0], [1], [0, 0, 1, 1], [], []>} : vector<16x256xbf16>, vector<256x128xbf16>, vector<16x128xf32> -> vector<16x128xf32>
    %c0_3 = arith.constant 0 : index
    %c0_4 = arith.constant 0 : index
    %3 = vector.load %arg3[%c0_3, %c0_4] : memref<1x128xf32, #tpu.memory_space<vmem>>, vector<1x128xf32>
    %4 = vector.broadcast %3 : vector<1x128xf32> to vector<16x128xf32>
    %5 = arith.addf %2, %4 : vector<16x128xf32>
    %c0_5 = arith.constant 0 : index
    %c0_6 = arith.constant 0 : index
    %6 = vector.load %arg4[%c0_5, %c0_6] : memref<16x128xf32, #tpu.memory_space<vmem>>, vector<16x128xf32>
    tpu.vector_store %arg4[%c0_5, %c0_6], %5 {strides = array<i32>} : memref<16x128xf32, #tpu.memory_space<vmem>>, vector<16x128xf32>,
    return
  }
  func.func @transform_0(%arg0: i32) -> (i32, i32) {
    %c0_i32 = arith.constant 0 : i32
    %c0_i32_0 = arith.constant 0 : i32
    return %arg0, %c0_i32 : i32, i32
  }
  func.func @transform_1(%arg0: i32) -> (i32, i32) {
    %c0_i32 = arith.constant 0 : i32
    %c0_i32_0 = arith.constant 0 : i32
    %c0_i32_1 = arith.constant 0 : i32
    return %c0_i32, %c0_i32_0 : i32, i32
  }
  func.func @transform_2(%arg0: i32) -> (i32, i32) {
    %c0_i32 = arith.constant 0 : i32
    %c0_i32_0 = arith.constant 0 : i32
    %c0_i32_1 = arith.constant 0 : i32
    return %c0_i32, %c0_i32_0 : i32, i32
  }
  func.func @transform_3(%arg0: i32) -> (i32, i32) {
    %c0_i32 = arith.constant 0 : i32
    %c0_i32_0 = arith.constant 0 : i32
    return %arg0, %c0_i32 : i32, i32
  }
}

</mosaic_0001>

<llo_original>
// kernel: tpu_custom_call.1
$region0: #{tpu_custom_call.1}
  #allocation0 [shape = 'u32[]', space=smem, size = 0x4, offset = 0x4, fixed_abs, tag = 'smem constant byte address 0x4 - core index']
  #allocation1 [shape = 'u32[144,128]{1,0:T(1,128)}', space=vmem, size = 0x12000, scoped, tag = 'internal scratch']
  %s0 = inlined_call_operand.hbm [shape: bf16[16,256], index: 0, kind: input, shape index: {}]
  %s1 = inlined_call_operand.hbm [shape: bf16[256,128], index: 1, kind: input, shape index: {}]
  %s2 = inlined_call_operand.vmem [shape: f32[1,128], index: 2, kind: input, shape index: {}]
  %s3 = inlined_call_operand.hbm [shape: f32[16,128], index: 3, kind: output, shape index: {}]
  %s4 = sld [smem:[#allocation0]]
  $region30: #{tpu_custom_call.1} parent=0
    _
  %s6 = ssub.s32 1, %s4
  %s7 = scalar_select 0, %s6, %s4
  $region1: #{tpu_custom_call.1} parent=0
    #allocation2 [shape = 'u8[8192]{0}', space=vmem, size = 0x2000, scoped, tag = 'input window, operand 0, single buffered']
    #allocation3 [shape = 's32[1]{0}', space=sflag, size = 0x4, scoped, tag = 'scoped memory for tpu_custom_call.1']
    #allocation4 [shape = 's32[1]{0}', space=sflag, size = 0x4, scoped, tag = 'scoped memory for tpu_custom_call.1']
    #allocation5 [shape = 'u8[65536]{0}', space=vmem, size = 0x10000, scoped, tag = 'input window, operand 1, single buffered']
    #allocation6 [shape = 's32[1]{0}', space=sflag, size = 0x4, scoped, tag = 'scoped memory for tpu_custom_call.1']
    #allocation7 [shape = 'u8[8192]{0}', space=vmem, size = 0x2000, scoped, tag = 'output window, operand 0, single buffered']
    %8 = vsyncpa [#allocation3], 0
    %9 = vsyncpa [#allocation6], 0
    %10 = vsyncpa [#allocation4], 0
    // Predicated region
    $region2: #{tpu_custom_call.1} parent=1 // pred_check
      _
    $region3: #{tpu_custom_call.1} parent=1 // pred_check_branch
      %12 = sbr.rel (0) target = $region5
    $region4: #{tpu_custom_call.1} parent=1 // pred_region
      %s14 = ssub.s32 256, 256
      %15 = vsyncadd [#allocation3], %s14
      %s16 = sshll.u32 [#allocation2], 4
      %s17 = int_to_ptr.vmem [resolvable:$true] %s16
      %22 = dma.hbm_to_vmem [thread:$0]  %s0, 256, %s17, [#allocation3], 128, 128, 8
    $region5: #{tpu_custom_call.1} parent=1 // pred_fallthru
      _
    // Predicated region
    $region6: #{tpu_custom_call.1} parent=1 // pred_check
      _
    $region7: #{tpu_custom_call.1} parent=1 // pred_check_branch
      %24 = sbr.rel (0) target = $region9
    $region8: #{tpu_custom_call.1} parent=1 // pred_region
      %s26 = ssub.s32 2048, 2048
      %27 = vsyncadd [#allocation6], %s26
      %s28 = sshll.u32 [#allocation5], 4
      %s29 = int_to_ptr.vmem [resolvable:$true] %s28
      %34 = dma.hbm_to_vmem [thread:$0]  %s1, 2048, %s29, [#allocation6], 64, 64, 4
    $region9: #{tpu_custom_call.1} parent=1 // pred_fallthru
      _
    // Predicated region
    $region10: #{tpu_custom_call.1} parent=1 // pred_check
      _
    $region11: #{tpu_custom_call.1} parent=1 // pred_check_branch
      %36 = sbr.rel (0) target = $region13
    $region12: #{tpu_custom_call.1} parent=1 // pred_region
      _
    $region13: #{tpu_custom_call.1} parent=1 // pred_fallthru
      _
    // Predicated region
    $region14: #{tpu_custom_call.1} parent=1 // pred_check
      _
    $region15: #{tpu_custom_call.1} parent=1 // pred_check_branch
      %38 = sbr.rel (0) target = $region17
    $region16: #{tpu_custom_call.1} parent=1 // pred_region
      %39 = dma.done [#allocation3], 256
    $region17: #{tpu_custom_call.1} parent=1 // pred_fallthru
      _
    // Predicated region
    $region18: #{tpu_custom_call.1} parent=1 // pred_check
      _
    $region19: #{tpu_custom_call.1} parent=1 // pred_check_branch
      %41 = sbr.rel (0) target = $region21
    $region20: #{tpu_custom_call.1} parent=1 // pred_region
      %42 = dma.done [#allocation6], 2048
    $region21: #{tpu_custom_call.1} parent=1 // pred_fallthru
      _
    %v44 = vld [vmem:[#allocation2] sm:$0xff]
    %v45 = vld [vmem:[#allocation2 + $0x8] sm:$0xff]
    %v46 = vld [vmem:[#allocation5] sm:$0xf]
    %v47 = vld [vmem:[#allocation5 + $0x4] sm:$0xf]
    %v48 = vld [vmem:[#allocation5 + $0x8] sm:$0xf]
    %v49 = vld [vmem:[#allocation5 + $0xc] sm:$0xf]
    %v50 = vld [vmem:[#allocation5 + $0x10] sm:$0xf]
    %v51 = vld [vmem:[#allocation5 + $0x14] sm:$0xf]
    %v52 = vld [vmem:[#allocation5 + $0x18] sm:$0xf]
    %v53 = vld [vmem:[#allocation5 + $0x1c] sm:$0xf]
    %v54 = vld [vmem:[#allocation5 + $0x20] sm:$0xf]
    %v55 = vld [vmem:[#allocation5 + $0x24] sm:$0xf]
    %v56 = vld [vmem:[#allocation5 + $0x28] sm:$0xf]
    %v57 = vld [vmem:[#allocation5 + $0x2c] sm:$0xf]
    %v58 = vld [vmem:[#allocation5 + $0x30] sm:$0xf]
    %v59 = vld [vmem:[#allocation5 + $0x34] sm:$0xf]
    %v60 = vld [vmem:[#allocation5 + $0x38] sm:$0xf]
    %v61 = vld [vmem:[#allocation5 + $0x3c] sm:$0xf]
    %v62 = vld [vmem:[#allocation5 + $0x40] sm:$0xf]
    %v63 = vld [vmem:[#allocation5 + $0x44] sm:$0xf]
    %v64 = vld [vmem:[#allocation5 + $0x48] sm:$0xf]
    %v65 = vld [vmem:[#allocation5 + $0x4c] sm:$0xf]
    %v66 = vld [vmem:[#allocation5 + $0x50] sm:$0xf]
    %v67 = vld [vmem:[#allocation5 + $0x54] sm:$0xf]
    %v68 = vld [vmem:[#allocation5 + $0x58] sm:$0xf]
    %v69 = vld [vmem:[#allocation5 + $0x5c] sm:$0xf]
    %v70 = vld [vmem:[#allocation5 + $0x60] sm:$0xf]
    %v71 = vld [vmem:[#allocation5 + $0x64] sm:$0xf]
    %v72 = vld [vmem:[#allocation5 + $0x68] sm:$0xf]
    %v73 = vld [vmem:[#allocation5 + $0x6c] sm:$0xf]
    %v74 = vld [vmem:[#allocation5 + $0x70] sm:$0xf]
    %v75 = vld [vmem:[#allocation5 + $0x74] sm:$0xf]
    %v76 = vld [vmem:[#allocation5 + $0x78] sm:$0xf]
    %v77 = vld [vmem:[#allocation5 + $0x7c] sm:$0xf]
    %v78 = vld [vmem:[%s2] sm:$0x1]
    %v80 = vlaneseq
    %v81 = vshrl.u32 %v80, 7
    %v82 = vsub.s32 0, %v81
    %v83 = vrot.slane %v78, %v82
    %v87 = vunpack.c.l.b16 %v44
    %v88 = vunpack.c.h.b16 %v44
    %v89 = vunpack.c.l.b16 %v45
    %v90 = vunpack.c.h.b16 %v45
    %v91 = vpack.c.b16 %v89, %v87
    %v92 = vpack.c.b16 %v90, %v88
    %v127 = vunpack.c.l.b16 %v46
    %v128 = vunpack.c.l.b16 %v47
    %v129 = vunpack.c.l.b16 %v48
    %v130 = vunpack.c.l.b16 %v49
    %v131 = vunpack.c.l.b16 %v50
    %v132 = vunpack.c.l.b16 %v51
    %v133 = vunpack.c.l.b16 %v52
    %v134 = vunpack.c.l.b16 %v53
    %v135 = vunpack.c.l.b16 %v54
    %v136 = vunpack.c.l.b16 %v55
    %v137 = vunpack.c.l.b16 %v56
    %v138 = vunpack.c.l.b16 %v57
    %v139 = vunpack.c.l.b16 %v58
    %v140 = vunpack.c.l.b16 %v59
    %v141 = vunpack.c.l.b16 %v60
    %v142 = vunpack.c.l.b16 %v61
    %v143 = vunpack.c.l.b16 %v62
    %v144 = vunpack.c.l.b16 %v63
    %v145 = vunpack.c.l.b16 %v64
    %v146 = vunpack.c.l.b16 %v65
    %v147 = vunpack.c.l.b16 %v66
    %v148 = vunpack.c.l.b16 %v67
    %v149 = vunpack.c.l.b16 %v68
    %v150 = vunpack.c.l.b16 %v69
    %v151 = vunpack.c.l.b16 %v70
    %v152 = vunpack.c.l.b16 %v71
    %v153 = vunpack.c.l.b16 %v72
    %v154 = vunpack.c.l.b16 %v73
    %v155 = vunpack.c.l.b16 %v74
    %v156 = vunpack.c.l.b16 %v75
    %v157 = vunpack.c.l.b16 %v76
    %v158 = vunpack.c.l.b16 %v77
    %v159 = vpack.c.b16 %v128, %v127
    %v160 = vpack.c.b16 %v130, %v129
    %v161 = vpack.c.b16 %v132, %v131
    %v162 = vpack.c.b16 %v134, %v133
    %v163 = vpack.c.b16 %v136, %v135
    %v164 = vpack.c.b16 %v138, %v137
    %v165 = vpack.c.b16 %v140, %v139
    %v166 = vpack.c.b16 %v142, %v141
    %v167 = vpack.c.b16 %v144, %v143
    %v168 = vpack.c.b16 %v146, %v145
    %v169 = vpack.c.b16 %v148, %v147
    %v170 = vpack.c.b16 %v150, %v149
    %v171 = vpack.c.b16 %v152, %v151
    %v172 = vpack.c.b16 %v154, %v153
    %v173 = vpack.c.b16 %v156, %v155
    %v174 = vpack.c.b16 %v158, %v157
    %191 = vmatprep.subr.bf16.mxu0 0
    %192 = vmatpush1.bf16.msra.mxu0 %v159
    %193 = vmatprep.subr.bf16.mxu0 0
    %194 = vmatpush1.bf16.msra.mxu0 %v160
    %195 = vmatprep.subr.bf16.mxu0 0
    %196 = vmatpush1.bf16.msra.mxu0 %v161
    %197 = vmatprep.subr.bf16.mxu0 0
    %198 = vmatpush1.bf16.msra.mxu0 %v162
    %199 = vmatprep.subr.bf16.mxu0 0
    %200 = vmatpush1.bf16.msra.mxu0 %v163
    %201 = vmatprep.subr.bf16.mxu0 0
    %202 = vmatpush1.bf16.msra.mxu0 %v164
    %203 = vmatprep.subr.bf16.mxu0 0
    %204 = vmatpush1.bf16.msra.mxu0 %v165
    %205 = vmatprep.subr.bf16.mxu0 0
    %206 = vmatpush1.bf16.msra.mxu0 %v166
    %207 = vmatprep.subr.bf16.mxu0 0
    %208 = vmatpush1.bf16.msra.mxu0 %v167
    %209 = vmatprep.subr.bf16.mxu0 0
    %210 = vmatpush1.bf16.msra.mxu0 %v168
    %211 = vmatprep.subr.bf16.mxu0 0
    %212 = vmatpush1.bf16.msra.mxu0 %v169
    %213 = vmatprep.subr.bf16.mxu0 0
    %214 = vmatpush1.bf16.msra.mxu0 %v170
    %215 = vmatprep.subr.bf16.mxu0 0
    %216 = vmatpush1.bf16.msra.mxu0 %v171
    %217 = vmatprep.subr.bf16.mxu0 0
    %218 = vmatpush1.bf16.msra.mxu0 %v172
    %219 = vmatprep.subr.bf16.mxu0 0
    %220 = vmatpush1.bf16.msra.mxu0 %v173
    %221 = vmatprep.subr.bf16.mxu0 0
    %222 = vmatpush1.bf16.msra.mxu0 %v174
    %223 = vmatprep.mubr.bf16.mxu0 %v92
    %224 = vmatmul.mubr.bf16.gmra.mrb[0].mxu0 %v91
    %v225 = vpop.f32.mrb[0].mxu0
    %v226 = vadd.f32 %v83, %v225
    %v227 = vpop.f32.mrb[0].mxu0
    %v228 = vpop.f32.mrb[0].mxu0
    %v229 = vadd.f32 %v83, %v228
    %v230 = vpop.f32.mrb[0].mxu0
    %231 = vdwg.mxu0
    %232 = vst [vmem:[#allocation7] sm:$0xff] %v226
    %233 = vst [vmem:[#allocation7 + $0x8] sm:$0xff] %v229
    // Predicated region
    $region22: #{tpu_custom_call.1} parent=1 // pred_check
      _
    $region23: #{tpu_custom_call.1} parent=1 // pred_check_branch
      %235 = sbr.rel (0) target = $region25
    $region24: #{tpu_custom_call.1} parent=1 // pred_region
      %s237 = ssub.s32 256, 256
      %238 = vsyncadd [#allocation4], %s237
      %s239 = sshll.u32 [#allocation7], 4
      %s240 = int_to_ptr.vmem [resolvable:$true] %s239
      %245 = dma.vmem_to_hbm [thread:$0]  %s240, 256, %s3, [#allocation4], 128, 128, 8
    $region25: #{tpu_custom_call.1} parent=1 // pred_fallthru
      _
    // Predicated region
    $region26: #{tpu_custom_call.1} parent=1 // pred_check
      _
    $region27: #{tpu_custom_call.1} parent=1 // pred_check_branch
      %247 = sbr.rel (0) target = $region29
    $region28: #{tpu_custom_call.1} parent=1 // pred_region
      %248 = dma.done [#allocation4], 256
    $region29: #{tpu_custom_call.1} parent=1 // pred_fallthru
      _
    %249 = vsyncpa [#allocation3], 1
    %250 = vsyncpa [#allocation6], 1
    %251 = vsyncpa [#allocation4], 1

// kernel: tpu_custom_call.1
$region0: #{tpu_custom_call.1}
  #allocation0 [shape = 'u32[]', space=smem, size = 0x4, offset = 0x4, fixed_abs, tag = 'smem constant byte address 0x4 - core index']
  #allocation1 [shape = 'u32[144,128]{1,0:T(1,128)}', space=vmem, size = 0x12000, scoped, tag = 'internal scratch']
  %s0 = inlined_call_operand.hbm [shape: bf16[16,256], index: 0, kind: input, shape index: {}]
  %s1 = inlined_call_operand.hbm [shape: bf16[256,128], index: 1, kind: input, shape index: {}]
  %s2 = inlined_call_operand.vmem [shape: f32[1,128], index: 2, kind: input, shape index: {}]
  %s3 = inlined_call_operand.hbm [shape: f32[16,128], index: 3, kind: output, shape index: {}]
  %s4 = sld [smem:[#allocation0]]
  $region30: #{tpu_custom_call.1} parent=0
    _
  %s6 = ssub.s32 1, %s4
  %s7 = scalar_select 0, %s6, %s4
  $region1: #{tpu_custom_call.1} parent=0
    #allocation2 [shape = 'u8[8192]{0}', space=vmem, size = 0x2000, scoped, tag = 'input window, operand 0, single buffered']
    #allocation3 [shape = 's32[1]{0}', space=sflag, size = 0x4, scoped, tag = 'scoped memory for tpu_custom_call.1']
    #allocation4 [shape = 's32[1]{0}', space=sflag, size = 0x4, scoped, tag = 'scoped memory for tpu_custom_call.1']
    #allocation5 [shape = 'u8[65536]{0}', space=vmem, size = 0x10000, scoped, tag = 'input window, operand 1, single buffered']
    #allocation6 [shape = 's32[1]{0}', space=sflag, size = 0x4, scoped, tag = 'scoped memory for tpu_custom_call.1']
    #allocation7 [shape = 'u8[8192]{0}', space=vmem, size = 0x2000, scoped, tag = 'output window, operand 0, single buffered']
    %8 = vsyncpa [#allocation3], 0
    %9 = vsyncpa [#allocation6], 0
    %10 = vsyncpa [#allocation4], 0
    // Predicated region
    $region2: #{tpu_custom_call.1} parent=1 // pred_check
      _
    $region3: #{tpu_custom_call.1} parent=1 // pred_check_branch
      %12 = sbr.rel (0) target = $region5
    $region4: #{tpu_custom_call.1} parent=1 // pred_region
      %s14 = ssub.s32 256, 256
      %15 = vsyncadd [#allocation3], %s14
      %s16 = sshll.u32 [#allocation2], 4
      %s17 = int_to_ptr.vmem [resolvable:$true] %s16
      %22 = dma.hbm_to_vmem [thread:$0]  %s0, 256, %s17, [#allocation3], 128, 128, 8
    $region5: #{tpu_custom_call.1} parent=1 // pred_fallthru
      _
    // Predicated region
    $region6: #{tpu_custom_call.1} parent=1 // pred_check
      _
    $region7: #{tpu_custom_call.1} parent=1 // pred_check_branch
      %24 = sbr.rel (0) target = $region9
    $region8: #{tpu_custom_call.1} parent=1 // pred_region
      %s26 = ssub.s32 2048, 2048
      %27 = vsyncadd [#allocation6], %s26
      %s28 = sshll.u32 [#allocation5], 4
      %s29 = int_to_ptr.vmem [resolvable:$true] %s28
      %34 = dma.hbm_to_vmem [thread:$0]  %s1, 2048, %s29, [#allocation6], 64, 64, 4
    $region9: #{tpu_custom_call.1} parent=1 // pred_fallthru
      _
    // Predicated region
    $region10: #{tpu_custom_call.1} parent=1 // pred_check
      _
    $region11: #{tpu_custom_call.1} parent=1 // pred_check_branch
      %36 = sbr.rel (0) target = $region13
    $region12: #{tpu_custom_call.1} parent=1 // pred_region
      _
    $region13: #{tpu_custom_call.1} parent=1 // pred_fallthru
      _
    // Predicated region
    $region14: #{tpu_custom_call.1} parent=1 // pred_check
      _
    $region15: #{tpu_custom_call.1} parent=1 // pred_check_branch
      %38 = sbr.rel (0) target = $region17
    $region16: #{tpu_custom_call.1} parent=1 // pred_region
      %39 = dma.done [#allocation3], 256
    $region17: #{tpu_custom_call.1} parent=1 // pred_fallthru
      _
    // Predicated region
    $region18: #{tpu_custom_call.1} parent=1 // pred_check
      _
    $region19: #{tpu_custom_call.1} parent=1 // pred_check_branch
      %41 = sbr.rel (0) target = $region21
    $region20: #{tpu_custom_call.1} parent=1 // pred_region
      %42 = dma.done [#allocation6], 2048
    $region21: #{tpu_custom_call.1} parent=1 // pred_fallthru
      _
    %v44 = vld [vmem:[#allocation2] sm:$0xff]
    %v45 = vld [vmem:[#allocation2 + $0x8] sm:$0xff]
    %v46 = vld [vmem:[#allocation5] sm:$0xf]
    %v47 = vld [vmem:[#allocation5 + $0x4] sm:$0xf]
    %v48 = vld [vmem:[#allocation5 + $0x8] sm:$0xf]
    %v49 = vld [vmem:[#allocation5 + $0xc] sm:$0xf]
    %v50 = vld [vmem:[#allocation5 + $0x10] sm:$0xf]
    %v51 = vld [vmem:[#allocation5 + $0x14] sm:$0xf]
    %v52 = vld [vmem:[#allocation5 + $0x18] sm:$0xf]
    %v53 = vld [vmem:[#allocation5 + $0x1c] sm:$0xf]
    %v54 = vld [vmem:[#allocation5 + $0x20] sm:$0xf]
    %v55 = vld [vmem:[#allocation5 + $0x24] sm:$0xf]
    %v56 = vld [vmem:[#allocation5 + $0x28] sm:$0xf]
    %v57 = vld [vmem:[#allocation5 + $0x2c] sm:$0xf]
    %v58 = vld [vmem:[#allocation5 + $0x30] sm:$0xf]
    %v59 = vld [vmem:[#allocation5 + $0x34] sm:$0xf]
    %v60 = vld [vmem:[#allocation5 + $0x38] sm:$0xf]
    %v61 = vld [vmem:[#allocation5 + $0x3c] sm:$0xf]
    %v62 = vld [vmem:[#allocation5 + $0x40] sm:$0xf]
    %v63 = vld [vmem:[#allocation5 + $0x44] sm:$0xf]
    %v64 = vld [vmem:[#allocation5 + $0x48] sm:$0xf]
    %v65 = vld [vmem:[#allocation5 + $0x4c] sm:$0xf]
    %v66 = vld [vmem:[#allocation5 + $0x50] sm:$0xf]
    %v67 = vld [vmem:[#allocation5 + $0x54] sm:$0xf]
    %v68 = vld [vmem:[#allocation5 + $0x58] sm:$0xf]
    %v69 = vld [vmem:[#allocation5 + $0x5c] sm:$0xf]
    %v70 = vld [vmem:[#allocation5 + $0x60] sm:$0xf]
    %v71 = vld [vmem:[#allocation5 + $0x64] sm:$0xf]
    %v72 = vld [vmem:[#allocation5 + $0x68] sm:$0xf]
    %v73 = vld [vmem:[#allocation5 + $0x6c] sm:$0xf]
    %v74 = vld [vmem:[#allocation5 + $0x70] sm:$0xf]
    %v75 = vld [vmem:[#allocation5 + $0x74] sm:$0xf]
    %v76 = vld [vmem:[#allocation5 + $0x78] sm:$0xf]
    %v77 = vld [vmem:[#allocation5 + $0x7c] sm:$0xf]
    %v78 = vld [vmem:[%s2] sm:$0x1]
    %v80 = vlaneseq
    %v81 = vshrl.u32 %v80, 7
    %v82 = vsub.s32 0, %v81
    %v83 = vrot.slane %v78, %v82
    %v87 = vunpack.c.l.b16 %v44
    %v88 = vunpack.c.h.b16 %v44
    %v89 = vunpack.c.l.b16 %v45
    %v90 = vunpack.c.h.b16 %v45
    %v91 = vpack.c.b16 %v89, %v87
    %v92 = vpack.c.b16 %v90, %v88
    %v127 = vunpack.c.l.b16 %v46
    %v128 = vunpack.c.l.b16 %v47
    %v129 = vunpack.c.l.b16 %v48
    %v130 = vunpack.c.l.b16 %v49
    %v131 = vunpack.c.l.b16 %v50
    %v132 = vunpack.c.l.b16 %v51
    %v133 = vunpack.c.l.b16 %v52
    %v134 = vunpack.c.l.b16 %v53
    %v135 = vunpack.c.l.b16 %v54
    %v136 = vunpack.c.l.b16 %v55
    %v137 = vunpack.c.l.b16 %v56
    %v138 = vunpack.c.l.b16 %v57
    %v139 = vunpack.c.l.b16 %v58
    %v140 = vunpack.c.l.b16 %v59
    %v141 = vunpack.c.l.b16 %v60
    %v142 = vunpack.c.l.b16 %v61
    %v143 = vunpack.c.l.b16 %v62
    %v144 = vunpack.c.l.b16 %v63
    %v145 = vunpack.c.l.b16 %v64
    %v146 = vunpack.c.l.b16 %v65
    %v147 = vunpack.c.l.b16 %v66
    %v148 = vunpack.c.l.b16 %v67
    %v149 = vunpack.c.l.b16 %v68
    %v150 = vunpack.c.l.b16 %v69
    %v151 = vunpack.c.l.b16 %v70
    %v152 = vunpack.c.l.b16 %v71
    %v153 = vunpack.c.l.b16 %v72
    %v154 = vunpack.c.l.b16 %v73
    %v155 = vunpack.c.l.b16 %v74
    %v156 = vunpack.c.l.b16 %v75
    %v157 = vunpack.c.l.b16 %v76
    %v158 = vunpack.c.l.b16 %v77
    %v159 = vpack.c.b16 %v128, %v127
    %v160 = vpack.c.b16 %v130, %v129
    %v161 = vpack.c.b16 %v132, %v131
    %v162 = vpack.c.b16 %v134, %v133
    %v163 = vpack.c.b16 %v136, %v135
    %v164 = vpack.c.b16 %v138, %v137
    %v165 = vpack.c.b16 %v140, %v139
    %v166 = vpack.c.b16 %v142, %v141
    %v167 = vpack.c.b16 %v144, %v143
    %v168 = vpack.c.b16 %v146, %v145
    %v169 = vpack.c.b16 %v148, %v147
    %v170 = vpack.c.b16 %v150, %v149
    %v171 = vpack.c.b16 %v152, %v151
    %v172 = vpack.c.b16 %v154, %v153
    %v173 = vpack.c.b16 %v156, %v155
    %v174 = vpack.c.b16 %v158, %v157
    %191 = vmatprep.subr.bf16.mxu0 0
    %192 = vmatpush1.bf16.msra.mxu0 %v159
    %193 = vmatprep.subr.bf16.mxu0 0
    %194 = vmatpush1.bf16.msra.mxu0 %v160
    %195 = vmatprep.subr.bf16.mxu0 0
    %196 = vmatpush1.bf16.msra.mxu0 %v161
    %197 = vmatprep.subr.bf16.mxu0 0
    %198 = vmatpush1.bf16.msra.mxu0 %v162
    %199 = vmatprep.subr.bf16.mxu0 0
    %200 = vmatpush1.bf16.msra.mxu0 %v163
    %201 = vmatprep.subr.bf16.mxu0 0
    %202 = vmatpush1.bf16.msra.mxu0 %v164
    %203 = vmatprep.subr.bf16.mxu0 0
    %204 = vmatpush1.bf16.msra.mxu0 %v165
    %205 = vmatprep.subr.bf16.mxu0 0
    %206 = vmatpush1.bf16.msra.mxu0 %v166
    %207 = vmatprep.subr.bf16.mxu0 0
    %208 = vmatpush1.bf16.msra.mxu0 %v167
    %209 = vmatprep.subr.bf16.mxu0 0
    %210 = vmatpush1.bf16.msra.mxu0 %v168
    %211 = vmatprep.subr.bf16.mxu0 0
    %212 = vmatpush1.bf16.msra.mxu0 %v169
    %213 = vmatprep.subr.bf16.mxu0 0
    %214 = vmatpush1.bf16.msra.mxu0 %v170
    %215 = vmatprep.subr.bf16.mxu0 0
    %216 = vmatpush1.bf16.msra.mxu0 %v171
    %217 = vmatprep.subr.bf16.mxu0 0
    %218 = vmatpush1.bf16.msra.mxu0 %v172
    %219 = vmatprep.subr.bf16.mxu0 0
    %220 = vmatpush1.bf16.msra.mxu0 %v173
    %221 = vmatprep.subr.bf16.mxu0 0
    %222 = vmatpush1.bf16.msra.mxu0 %v174
    %223 = vmatprep.mubr.bf16.mxu0 %v92
    %224 = vmatmul.mubr.bf16.gmra.mrb[0].mxu0 %v91
    %v225 = vpop.f32.mrb[0].mxu0
    %v226 = vadd.f32 %v83, %v225
    %v227 = vpop.f32.mrb[0].mxu0
    %v228 = vpop.f32.mrb[0].mxu0
    %v229 = vadd.f32 %v83, %v228
    %v230 = vpop.f32.mrb[0].mxu0
    %231 = vdwg.mxu0
    %232 = vst [vmem:[#allocation7] sm:$0xff] %v226
    %233 = vst [vmem:[#allocation7 + $0x8] sm:$0xff] %v229
    // Predicated region
    $region22: #{tpu_custom_call.1} parent=1 // pred_check
      _
    $region23: #{tpu_custom_call.1} parent=1 // pred_check_branch
      %235 = sbr.rel (0) target = $region25
    $region24: #{tpu_custom_call.1} parent=1 // pred_region
      %s237 = ssub.s32 256, 256
      %238 = vsyncadd [#allocation4], %s237
      %s239 = sshll.u32 [#allocation7], 4
      %s240 = int_to_ptr.vmem [resolvable:$true] %s239
      %245 = dma.vmem_to_hbm [thread:$0]  %s240, 256, %s3, [#allocation4], 128, 128, 8
    $region25: #{tpu_custom_call.1} parent=1 // pred_fallthru
      _
    // Predicated region
    $region26: #{tpu_custom_call.1} parent=1 // pred_check
      _
    $region27: #{tpu_custom_call.1} parent=1 // pred_check_branch
      %247 = sbr.rel (0) target = $region29
    $region28: #{tpu_custom_call.1} parent=1 // pred_region
      %248 = dma.done [#allocation4], 256
    $region29: #{tpu_custom_call.1} parent=1 // pred_fallthru
      _
    %249 = vsyncpa [#allocation3], 1
    %250 = vsyncpa [#allocation6], 1
    %251 = vsyncpa [#allocation4], 1

</llo_original>
